<compile_context>
chip_gen: v6e
topology: v6e:2x2x1
jax: 0.10.0
libtpu: 0.0.40
codegen_flags: <defaults>
</compile_context>

<pallas_src>
import jax
import jax.numpy as jnp
from jax.experimental import pallas as pl
from jax.experimental.pallas import tpu as pltpu


def _round_up(x: int, m: int) -> int:
    return (x + m - 1) // m * m


def _pad_to(arr, rows, cols):
    r, c = arr.shape
    if r == rows and c == cols:
        return arr
    return jnp.pad(arr, ((0, rows - r), (0, cols - c)))


def _tpu_config():
    """Generation-aware tiling knobs (cores, default tile, VMEM budget/limit)."""
    try:
        kind = jax.devices()[0].device_kind.lower()
    except Exception:  # pragma: no cover - defensive
        kind = ""
    if "v7" in kind:
        # 2 TensorCores, 64 MiB VMEM per TC (32 MiB scoped default).
        return dict(cores=2, tile=512, budget=28 << 20, vmem_limit=48 << 20)
    if "v6" in kind or "v5 lite" in kind or "v5e" in kind or "v5lite" in kind:
        # 1 TensorCore, 128 MiB VMEM -> bigger tiles, raise scoped limit.
        return dict(cores=1, tile=1024, budget=56 << 20, vmem_limit=96 << 20)
    # Unknown generation: conservative defaults, leave VMEM limit alone.
    return dict(cores=1, tile=512, budget=24 << 20, vmem_limit=None)


# ----------------------------------------------------------------------------
# Kernel
# ----------------------------------------------------------------------------
def _make_discriminator_mt_kernel(n_hidden_layers: int, compute_dtype):
    """Fused DiscriminatorMT forward kernel.

    Ref order:
      x_ref,                                       # (tn, emb)  f32 (cast in-kernel)
      (W_i, b_i) for i in range(n_hidden_layers),  # W bf16 (in, hid_p), b f32 (1, hid_p)
      W_head, b_head,                              # fused [obj11 | obj2] head, 128-lane padded
      out_ref                                      # (tn, head_p) f32
    """

    def kernel(*refs):
        x_ref = refs[0]
        idx = 1

        # In-kernel downcast: x streamed once from HBM as f32, no wrapper copy.
        h = x_ref[...].astype(compute_dtype)

        # --- MTnet trunk: dis_layers x (Linear -> LeakyReLU(0.2)) ---
        # (dropout = identity, eval mode)
        for _ in range(n_hidden_layers):
            w = refs[idx][...]
            b = refs[idx + 1][...]
            idx += 2
            acc = jnp.dot(h, w, preferred_element_type=jnp.float32) + b
            acc = jnp.maximum(acc, 0.2 * acc)  # LeakyReLU(0.2)
            h = acc.astype(compute_dtype)

        w_head = refs[idx][...]
        b_head = refs[idx + 1][...]
        out_ref = refs[idx + 2]

        # --- fused heads: one matmul, one lane-dense store ---
        # column 0          : obj11 logits -> sigmoid (out_obj12)
        # columns 1..n_gaze : obj2 outputs
        # columns n_gaze+1..: zero padding (zero weights/bias), sliced off outside
        logits = jnp.dot(h, w_head, preferred_element_type=jnp.float32) + b_head
        col = jax.lax.broadcasted_iota(jnp.int32, logits.shape, 1)
        fused = jnp.where(col == 0, jax.nn.sigmoid(logits), logits)
        out_ref[...] = fused.astype(out_ref.dtype)

    return kernel


# ----------------------------------------------------------------------------
# Wrapper
# ----------------------------------------------------------------------------
def discriminator_mt_forward(
    x, trunk_params, w11, b11, w2, b2, *, batch_tile=None,
    compute_dtype=jnp.bfloat16, lane_pad=128,
):
    """Runs DiscriminatorMT.forward (eval mode).

    x            : (N, emb_dim) float32 (bf16 also accepted)
    trunk_params : list of (W, b) with W: (in, out), b: (1, out)
    w11          : (hid, 1),   b11: (1, 1)
    w2           : (hid, n_gaze_feat), b2: (1, n_gaze_feat)

    Returns (out_obj12, out_obj2) with shapes (N,), (N, n_gaze_feat).
    """
    n, emb_dim = x.shape
    n_layers = len(trunk_params)
    hid = trunk_params[-1][0].shape[1] if n_layers else emb_dim
    n_gaze = w2.shape[1]
    n_head = 1 + n_gaze

    # Zero-pad hidden / head widths to full 128-lane vregs.  Zero weight
    # columns + zero bias stay exactly zero through LeakyReLU, and padded rows
    # of the next layer multiply those zeros, so this is numerically a no-op.
    hid_p = _round_up(hid, lane_pad)
    head_p = _round_up(n_head, lane_pad)
    head_in = hid_p if n_layers else hid  # if no trunk, heads act on raw emb

    flat_params = []
    for li, (w, b) in enumerate(trunk_params):
        in_dim = w.shape[0] if li == 0 else hid_p
        flat_params.append(_pad_to(w.astype(compute_dtype), in_dim, hid_p))
        flat_params.append(_pad_to(b.reshape(1, -1).astype(jnp.float32), 1, hid_p))

    w_head = jnp.concatenate([w11, w2], axis=1)
    b_head = jnp.concatenate([b11.reshape(1, -1), b2.reshape(1, -1)], axis=1)
    flat_params.append(_pad_to(w_head.astype(compute_dtype), head_in, head_p))
    flat_params.append(_pad_to(b_head.astype(jnp.float32), 1, head_p))

    # ---- generation-aware batch tiling ----
    cfg = _tpu_config()
    weight_bytes = sum(int(p.size) * p.dtype.itemsize for p in flat_params)
    x_itemsize = jnp.dtype(x.dtype).itemsize
    # Per-row VMEM: double-buffered x tile + double-buffered f32 output tile.
    per_row = 2 * emb_dim * x_itemsize + 2 * head_p * 4
    avail = cfg["budget"] - 2 * weight_bytes  # conservative: 2x weights
    tn_cap = max(8, (avail // per_row) // 8 * 8)
    tile = int(batch_tile) if batch_tile is not None else cfg["tile"]
    tile = max(8, min(tile // 8 * 8, tn_cap))

    if cfg["cores"] > 1 and n > 8:
        # v7x: even step count so both TensorCores get equal work on the
        # "parallel" batch axis.
        target_steps = max(cfg["cores"], -(-n // tile))
        target_steps = _round_up(target_steps, cfg["cores"])
        tn = min(tile, _round_up(-(-n // target_steps), 8))
    else:
        # 1 TensorCore: largest tile that fits the VMEM budget, no half-cap.
        tn = n if n <= tile else tile

    steps = -(-n // tn)
    if steps == 1:
        tn = n  # single exact block (block dim == full array dim is legal)
        steps = 1
    n_rows = steps * tn  # output rows (>= n); OOB input rows are garbage but
    #                      row-independent and sliced off below.

    grid = (steps,)
    x_spec = pl.BlockSpec((tn, emb_dim), lambda i: (i, 0))
    out_spec = pl.BlockSpec((tn, head_p), lambda i: (i, 0))
    out_shape = jax.ShapeDtypeStruct((n_rows, head_p), jnp.float32)

    # Advisory cost estimate so XLA can schedule/overlap around the call.
    flops = 2 * n_rows * (
        emb_dim * hid_p + max(0, n_layers - 1) * hid_p * hid_p + head_in * head_p
    )
    bytes_accessed = (
        n * emb_dim * x_itemsize + weight_bytes + n_rows * head_p * 4
    )
    cost = pl.CostEstimate(
        flops=int(flops),
        transcendentals=int(n_rows * head_p),  # sigmoid over all padded cols
        bytes_accessed=int(bytes_accessed),
    )

    kernel = _make_discriminator_mt_kernel(n_layers, compute_dtype)

    def build(single_buffer_weights):
        # Grid-invariant params: full block, constant index_map.  With
        # Buffered(1) they keep a single resident VMEM copy.
        def const_spec(arr):
            if single_buffer_weights:
                return pl.BlockSpec(arr.shape, lambda i: (0, 0),
                                    pipeline_mode=pl.Buffered(buffer_count=1))
            return pl.BlockSpec(arr.shape, lambda i: (0, 0))

        in_specs = [x_spec] + [const_spec(p) for p in flat_params]
        return pl.pallas_call(
            kernel,
            out_shape=out_shape,
            grid_spec=pltpu.PrefetchScalarGridSpec(
                num_scalar_prefetch=0,
                grid=grid,
                in_specs=in_specs,
                out_specs=out_spec,
            ),
            compiler_params=pltpu.CompilerParams(
                dimension_semantics=("parallel",),
                vmem_limit_bytes=cfg["vmem_limit"],
            ),
            cost_estimate=cost,
        )

    try:
        out = build(True)(x, *flat_params)
        out = jax.block_until_ready(out)
    except Exception:
        # Installed Pallas rejected single-buffered specs; use defaults.
        out = build(False)(x, *flat_params)

    out = out[:n]
    # column 0 = sigmoid(obj11) -> matches `out_obj12.view(-1)`; 1..n_head = obj2.
    return out[:, 0], out[:, 1:n_head]


# ----------------------------------------------------------------------------
# Deterministic parameter init + reference + main
# ----------------------------------------------------------------------------
def _init_linear(key, in_dim, out_dim):
    """PyTorch-style nn.Linear init, weight returned as (in_dim, out_dim)."""
    kw, kb = jax.random.split(key)
    bound = 1.0 / jnp.sqrt(in_dim)
    w = jax.random.uniform(kw, (in_dim, out_dim), jnp.float32, -bound, bound)
    b = jax.random.uniform(kb, (1, out_dim), jnp.float32, -bound, bound)
    return w, b


def _reference_forward(x, trunk_params, w11, b11, w2, b2):
    h = x
    for (w, b) in trunk_params:
        h = h @ w + b
        h = jnp.where(h > 0.0, h, 0.2 * h)
    o11 = jax.nn.sigmoid(h @ w11 + b11).reshape(-1)
    o2 = h @ w2 + b2
    return o11, o2


if __name__ == "__main__":
    # Small, module-consistent shapes.  batch=24 exercises the ragged-tail /
    # even-step tiling paths without any wrapper-side padding of x.
    batch = 24
    emb_dim = 32        # params.emb_dim
    dis_hid_dim = 32    # params.dis_hid_dim
    dis_layers = 2      # params.dis_layers
    n_gaze_feat = 8     # params.n_gaze_feat

    key = jax.random.PRNGKey(0)
    keys = jax.random.split(key, dis_layers + 3)

    x = jax.random.normal(keys[0], (batch, emb_dim), jnp.float32)

    trunk_params = []
    for i in range(dis_layers):
        in_dim = emb_dim if i == 0 else dis_hid_dim
        trunk_params.append(_init_linear(keys[1 + i], in_dim, dis_hid_dim))

    w11, b11 = _init_linear(keys[1 + dis_layers], dis_hid_dim, 1)
    w2, b2 = _init_linear(keys[2 + dis_layers], dis_hid_dim, n_gaze_feat)

    out11, out2 = discriminator_mt_forward(x, trunk_params, w11, b11, w2, b2)
    jax.block_until_ready((out11, out2))

    # Sanity check against a pure-JAX f32 reference (kernel streams bf16 with
    # f32 accumulation, so tolerance is relaxed accordingly).
    ref11, ref2 = _reference_forward(x, trunk_params, w11, b11, w2, b2)
    assert out11.shape == (batch,)
    assert out2.shape == (batch, n_gaze_feat)
    assert jnp.allclose(out11, ref11, atol=5e-2, rtol=5e-2), (
        float(jnp.max(jnp.abs(out11 - ref11)))
    )
    assert jnp.allclose(out2, ref2, atol=5e-2, rtol=5e-2), (
        float(jnp.max(jnp.abs(out2 - ref2)))
    )

    print("KERNEL_OK")
</pallas_src>

<mosaic_0001>
module attributes {stable_mosaic.version = 11 : i64} {
  func.func @kernel(%arg0: i32, %arg1: memref<24x32xf32, #tpu.memory_space<vmem>>, %arg2: memref<32x128xbf16, #tpu.memory_space<vmem>>, %arg3: memref<1x128xf32, #tpu.memory_space<vmem>>, %arg4: memref<128x128xbf16, #tpu.memory_space<vmem>>, %arg5: memref<1x128xf32, #tpu.memory_space<vmem>>, %arg6: memref<128x128xbf16, #tpu.memory_space<vmem>>, %arg7: memref<1x128xf32, #tpu.memory_space<vmem>>, %arg8: memref<24x128xf32, #tpu.memory_space<vmem>>) attributes {dimension_semantics = [#tpu.dimension_semantics<parallel>], iteration_bounds = array<i64: 1>, scalar_prefetch = 0 : i64, scratch_operands = 0 : i64, tpu.core_type = #tpu.core_type<tc>, window_params = [{transform_indices = @transform_0, window_bounds = array<i64: 24, 32>}, {pipeline_mode = #tpu.pipeline_mode<synchronous>, transform_indices = @transform_1, window_bounds = array<i64: 32, 128>}, {pipeline_mode = #tpu.pipeline_mode<synchronous>, transform_indices = @transform_2, window_bounds = array<i64: 1, 128>}, {pipeline_mode = #tpu.pipeline_mode<synchronous>, transform_indices = @transform_3, window_bounds = array<i64: 128, 128>}, {pipeline_mode = #tpu.pipeline_mode<synchronous>, transform_indices = @transform_4, window_bounds = array<i64: 1, 128>}, {pipeline_mode = #tpu.pipeline_mode<synchronous>, transform_indices = @transform_5, window_bounds = array<i64: 128, 128>}, {pipeline_mode = #tpu.pipeline_mode<synchronous>, transform_indices = @transform_6, window_bounds = array<i64: 1, 128>}, {transform_indices = @transform_7, window_bounds = array<i64: 24, 128>}]} {
    %c0 = arith.constant 0 : index
    %c0_0 = arith.constant 0 : index
    %0 = vector.load %arg1[%c0, %c0_0] : memref<24x32xf32, #tpu.memory_space<vmem>>, vector<24x32xf32>
    %1 = arith.truncf %0 : vector<24x32xf32> to vector<24x32xbf16>
    %c0_1 = arith.constant 0 : index
    %c0_2 = arith.constant 0 : index
    %2 = vector.load %arg2[%c0_1, %c0_2] : memref<32x128xbf16, #tpu.memory_space<vmem>>, vector<32x128xbf16>
    %c0_3 = arith.constant 0 : index
    %c0_4 = arith.constant 0 : index
    %3 = vector.load %arg3[%c0_3, %c0_4] : memref<1x128xf32, #tpu.memory_space<vmem>>, vector<1x128xf32>
    %cst = arith.constant dense<0.000000e+00> : vector<24x128xf32>
    %4 = tpu.matmul %1, %2, %cst {dimension_numbers = #tpu.dot_dimension_numbers<[1], [0], [0], [1], [0, 0, 1, 1], [], []>} : vector<24x32xbf16>, vector<32x128xbf16>, vector<24x128xf32> -> vector<24x128xf32>
    %5 = vector.broadcast %3 : vector<1x128xf32> to vector<24x128xf32>
    %6 = arith.addf %4, %5 : vector<24x128xf32>
    %cst_5 = arith.constant 2.000000e-01 : f32
    %7 = vector.broadcast %cst_5 : f32 to vector<24x128xf32>
    %8 = arith.mulf %7, %6 : vector<24x128xf32>
    %9 = arith.maximumf %6, %8 : vector<24x128xf32>
    %10 = arith.truncf %9 : vector<24x128xf32> to vector<24x128xbf16>
    %c0_6 = arith.constant 0 : index
    %c0_7 = arith.constant 0 : index
    %11 = vector.load %arg4[%c0_6, %c0_7] : memref<128x128xbf16, #tpu.memory_space<vmem>>, vector<128x128xbf16>
    %c0_8 = arith.constant 0 : index
    %c0_9 = arith.constant 0 : index
    %12 = vector.load %arg5[%c0_8, %c0_9] : memref<1x128xf32, #tpu.memory_space<vmem>>, vector<1x128xf32>
    %cst_10 = arith.constant dense<0.000000e+00> : vector<24x128xf32>
    %13 = tpu.matmul %10, %11, %cst_10 {dimension_numbers = #tpu.dot_dimension_numbers<[1], [0], [0], [1], [0, 0, 1, 1], [], []>} : vector<24x128xbf16>, vector<128x128xbf16>, vector<24x128xf32> -> vector<24x128xf32>
    %14 = vector.broadcast %12 : vector<1x128xf32> to vector<24x128xf32>
    %15 = arith.addf %13, %14 : vector<24x128xf32>
    %cst_11 = arith.constant 2.000000e-01 : f32
    %16 = vector.broadcast %cst_11 : f32 to vector<24x128xf32>
    %17 = arith.mulf %16, %15 : vector<24x128xf32>
    %18 = arith.maximumf %15, %17 : vector<24x128xf32>
    %19 = arith.truncf %18 : vector<24x128xf32> to vector<24x128xbf16>
    %c0_12 = arith.constant 0 : index
    %c0_13 = arith.constant 0 : index
    %20 = vector.load %arg6[%c0_12, %c0_13] : memref<128x128xbf16, #tpu.memory_space<vmem>>, vector<128x128xbf16>
    %c0_14 = arith.constant 0 : index
    %c0_15 = arith.constant 0 : index
    %21 = vector.load %arg7[%c0_14, %c0_15] : memref<1x128xf32, #tpu.memory_space<vmem>>, vector<1x128xf32>
    %cst_16 = arith.constant dense<0.000000e+00> : vector<24x128xf32>
    %22 = tpu.matmul %19, %20, %cst_16 {dimension_numbers = #tpu.dot_dimension_numbers<[1], [0], [0], [1], [0, 0, 1, 1], [], []>} : vector<24x128xbf16>, vector<128x128xbf16>, vector<24x128xf32> -> vector<24x128xf32>
    %23 = vector.broadcast %21 : vector<1x128xf32> to vector<24x128xf32>
    %24 = arith.addf %22, %23 : vector<24x128xf32>
    %25 = tpu.iota {dimensions = array<i32: 1>} : vector<24x128xi32>
    %c0_i32 = arith.constant 0 : i32
    %26 = vector.broadcast %c0_i32 : i32 to vector<24x128xi32>
    %27 = arith.cmpi eq, %25, %26 : vector<24x128xi32>
    %28 = arith.negf %24 : vector<24x128xf32>
    %29 = math.exp %28 : vector<24x128xf32>
    %cst_17 = arith.constant 1.000000e+00 : f32
    %30 = vector.broadcast %cst_17 : f32 to vector<24x128xf32>
    %31 = arith.addf %30, %29 : vector<24x128xf32>
    %32 = arith.divf %30, %31 : vector<24x128xf32>
    %33 = arith.select %27, %32, %24 : vector<24x128xi1>, vector<24x128xf32>
    %c0_18 = arith.constant 0 : index
    %c0_19 = arith.constant 0 : index
    %34 = vector.load %arg8[%c0_18, %c0_19] : memref<24x128xf32, #tpu.memory_space<vmem>>, vector<24x128xf32>
    tpu.vector_store %arg8[%c0_18, %c0_19], %33 {strides = array<i32>} : memref<24x128xf32, #tpu.memory_space<vmem>>, vector<24x128xf32>,
    return
  }
  func.func @transform_0(%arg0: i32) -> (i32, i32) {
    %c0_i32 = arith.constant 0 : i32
    %c0_i32_0 = arith.constant 0 : i32
    return %arg0, %c0_i32 : i32, i32
  }
  func.func @transform_1(%arg0: i32) -> (i32, i32) {
    %c0_i32 = arith.constant 0 : i32
    %c0_i32_0 = arith.constant 0 : i32
    %c0_i32_1 = arith.constant 0 : i32
    return %c0_i32, %c0_i32_0 : i32, i32
  }
  func.func @transform_2(%arg0: i32) -> (i32, i32) {
    %c0_i32 = arith.constant 0 : i32
    %c0_i32_0 = arith.constant 0 : i32
    %c0_i32_1 = arith.constant 0 : i32
    return %c0_i32, %c0_i32_0 : i32, i32
  }
  func.func @transform_3(%arg0: i32) -> (i32, i32) {
    %c0_i32 = arith.constant 0 : i32
    %c0_i32_0 = arith.constant 0 : i32
    %c0_i32_1 = arith.constant 0 : i32
    return %c0_i32, %c0_i32_0 : i32, i32
  }
  func.func @transform_4(%arg0: i32) -> (i32, i32) {
    %c0_i32 = arith.constant 0 : i32
    %c0_i32_0 = arith.constant 0 : i32
    %c0_i32_1 = arith.constant 0 : i32
    return %c0_i32, %c0_i32_0 : i32, i32
  }
  func.func @transform_5(%arg0: i32) -> (i32, i32) {
    %c0_i32 = arith.constant 0 : i32
    %c0_i32_0 = arith.constant 0 : i32
    %c0_i32_1 = arith.constant 0 : i32
    return %c0_i32, %c0_i32_0 : i32, i32
  }
  func.func @transform_6(%arg0: i32) -> (i32, i32) {
    %c0_i32 = arith.constant 0 : i32
    %c0_i32_0 = arith.constant 0 : i32
    %c0_i32_1 = arith.constant 0 : i32
    return %c0_i32, %c0_i32_0 : i32, i32
  }
  func.func @transform_7(%arg0: i32) -> (i32, i32) {
    %c0_i32 = arith.constant 0 : i32
    %c0_i32_0 = arith.constant 0 : i32
    return %arg0, %c0_i32 : i32, i32
  }
}

module attributes {stable_mosaic.version = 11 : i64} {
  func.func @kernel(%arg0: i32, %arg1: memref<24x32xf32, #tpu.memory_space<vmem>>, %arg2: memref<32x128xbf16, #tpu.memory_space<vmem>>, %arg3: memref<1x128xf32, #tpu.memory_space<vmem>>, %arg4: memref<128x128xbf16, #tpu.memory_space<vmem>>, %arg5: memref<1x128xf32, #tpu.memory_space<vmem>>, %arg6: memref<128x128xbf16, #tpu.memory_space<vmem>>, %arg7: memref<1x128xf32, #tpu.memory_space<vmem>>, %arg8: memref<24x128xf32, #tpu.memory_space<vmem>>) attributes {dimension_semantics = [#tpu.dimension_semantics<parallel>], iteration_bounds = array<i64: 1>, scalar_prefetch = 0 : i64, scratch_operands = 0 : i64, tpu.core_type = #tpu.core_type<tc>, window_params = [{transform_indices = @transform_0, window_bounds = array<i64: 24, 32>}, {pipeline_mode = #tpu.pipeline_mode<synchronous>, transform_indices = @transform_1, window_bounds = array<i64: 32, 128>}, {pipeline_mode = #tpu.pipeline_mode<synchronous>, transform_indices = @transform_2, window_bounds = array<i64: 1, 128>}, {pipeline_mode = #tpu.pipeline_mode<synchronous>, transform_indices = @transform_3, window_bounds = array<i64: 128, 128>}, {pipeline_mode = #tpu.pipeline_mode<synchronous>, transform_indices = @transform_4, window_bounds = array<i64: 1, 128>}, {pipeline_mode = #tpu.pipeline_mode<synchronous>, transform_indices = @transform_5, window_bounds = array<i64: 128, 128>}, {pipeline_mode = #tpu.pipeline_mode<synchronous>, transform_indices = @transform_6, window_bounds = array<i64: 1, 128>}, {transform_indices = @transform_7, window_bounds = array<i64: 24, 128>}]} {
    %c0 = arith.constant 0 : index
    %c0_0 = arith.constant 0 : index
    %0 = vector.load %arg1[%c0, %c0_0] : memref<24x32xf32, #tpu.memory_space<vmem>>, vector<24x32xf32>
    %1 = arith.truncf %0 : vector<24x32xf32> to vector<24x32xbf16>
    %c0_1 = arith.constant 0 : index
    %c0_2 = arith.constant 0 : index
    %2 = vector.load %arg2[%c0_1, %c0_2] : memref<32x128xbf16, #tpu.memory_space<vmem>>, vector<32x128xbf16>
    %c0_3 = arith.constant 0 : index
    %c0_4 = arith.constant 0 : index
    %3 = vector.load %arg3[%c0_3, %c0_4] : memref<1x128xf32, #tpu.memory_space<vmem>>, vector<1x128xf32>
    %cst = arith.constant dense<0.000000e+00> : vector<24x128xf32>
    %4 = tpu.matmul %1, %2, %cst {dimension_numbers = #tpu.dot_dimension_numbers<[1], [0], [0], [1], [0, 0, 1, 1], [], []>} : vector<24x32xbf16>, vector<32x128xbf16>, vector<24x128xf32> -> vector<24x128xf32>
    %5 = vector.broadcast %3 : vector<1x128xf32> to vector<24x128xf32>
    %6 = arith.addf %4, %5 : vector<24x128xf32>
    %cst_5 = arith.constant 2.000000e-01 : f32
    %7 = vector.broadcast %cst_5 : f32 to vector<24x128xf32>
    %8 = arith.mulf %7, %6 : vector<24x128xf32>
    %9 = arith.maximumf %6, %8 : vector<24x128xf32>
    %10 = arith.truncf %9 : vector<24x128xf32> to vector<24x128xbf16>
    %c0_6 = arith.constant 0 : index
    %c0_7 = arith.constant 0 : index
    %11 = vector.load %arg4[%c0_6, %c0_7] : memref<128x128xbf16, #tpu.memory_space<vmem>>, vector<128x128xbf16>
    %c0_8 = arith.constant 0 : index
    %c0_9 = arith.constant 0 : index
    %12 = vector.load %arg5[%c0_8, %c0_9] : memref<1x128xf32, #tpu.memory_space<vmem>>, vector<1x128xf32>
    %cst_10 = arith.constant dense<0.000000e+00> : vector<24x128xf32>
    %13 = tpu.matmul %10, %11, %cst_10 {dimension_numbers = #tpu.dot_dimension_numbers<[1], [0], [0], [1], [0, 0, 1, 1], [], []>} : vector<24x128xbf16>, vector<128x128xbf16>, vector<24x128xf32> -> vector<24x128xf32>
    %14 = vector.broadcast %12 : vector<1x128xf32> to vector<24x128xf32>
    %15 = arith.addf %13, %14 : vector<24x128xf32>
    %cst_11 = arith.constant 2.000000e-01 : f32
    %16 = vector.broadcast %cst_11 : f32 to vector<24x128xf32>
    %17 = arith.mulf %16, %15 : vector<24x128xf32>
    %18 = arith.maximumf %15, %17 : vector<24x128xf32>
    %19 = arith.truncf %18 : vector<24x128xf32> to vector<24x128xbf16>
    %c0_12 = arith.constant 0 : index
    %c0_13 = arith.constant 0 : index
    %20 = vector.load %arg6[%c0_12, %c0_13] : memref<128x128xbf16, #tpu.memory_space<vmem>>, vector<128x128xbf16>
    %c0_14 = arith.constant 0 : index
    %c0_15 = arith.constant 0 : index
    %21 = vector.load %arg7[%c0_14, %c0_15] : memref<1x128xf32, #tpu.memory_space<vmem>>, vector<1x128xf32>
    %cst_16 = arith.constant dense<0.000000e+00> : vector<24x128xf32>
    %22 = tpu.matmul %19, %20, %cst_16 {dimension_numbers = #tpu.dot_dimension_numbers<[1], [0], [0], [1], [0, 0, 1, 1], [], []>} : vector<24x128xbf16>, vector<128x128xbf16>, vector<24x128xf32> -> vector<24x128xf32>
    %23 = vector.broadcast %21 : vector<1x128xf32> to vector<24x128xf32>
    %24 = arith.addf %22, %23 : vector<24x128xf32>
    %25 = tpu.iota {dimensions = array<i32: 1>} : vector<24x128xi32>
    %c0_i32 = arith.constant 0 : i32
    %26 = vector.broadcast %c0_i32 : i32 to vector<24x128xi32>
    %27 = arith.cmpi eq, %25, %26 : vector<24x128xi32>
    %28 = arith.negf %24 : vector<24x128xf32>
    %29 = math.exp %28 : vector<24x128xf32>
    %cst_17 = arith.constant 1.000000e+00 : f32
    %30 = vector.broadcast %cst_17 : f32 to vector<24x128xf32>
    %31 = arith.addf %30, %29 : vector<24x128xf32>
    %32 = arith.divf %30, %31 : vector<24x128xf32>
    %33 = arith.select %27, %32, %24 : vector<24x128xi1>, vector<24x128xf32>
    %c0_18 = arith.constant 0 : index
    %c0_19 = arith.constant 0 : index
    %34 = vector.load %arg8[%c0_18, %c0_19] : memref<24x128xf32, #tpu.memory_space<vmem>>, vector<24x128xf32>
    tpu.vector_store %arg8[%c0_18, %c0_19], %33 {strides = array<i32>} : memref<24x128xf32, #tpu.memory_space<vmem>>, vector<24x128xf32>,
    return
  }
  func.func @transform_0(%arg0: i32) -> (i32, i32) {
    %c0_i32 = arith.constant 0 : i32
    %c0_i32_0 = arith.constant 0 : i32
    return %arg0, %c0_i32 : i32, i32
  }
  func.func @transform_1(%arg0: i32) -> (i32, i32) {
    %c0_i32 = arith.constant 0 : i32
    %c0_i32_0 = arith.constant 0 : i32
    %c0_i32_1 = arith.constant 0 : i32
    return %c0_i32, %c0_i32_0 : i32, i32
  }
  func.func @transform_2(%arg0: i32) -> (i32, i32) {
    %c0_i32 = arith.constant 0 : i32
    %c0_i32_0 = arith.constant 0 : i32
    %c0_i32_1 = arith.constant 0 : i32
    return %c0_i32, %c0_i32_0 : i32, i32
  }
  func.func @transform_3(%arg0: i32) -> (i32, i32) {
    %c0_i32 = arith.constant 0 : i32
    %c0_i32_0 = arith.constant 0 : i32
    %c0_i32_1 = arith.constant 0 : i32
    return %c0_i32, %c0_i32_0 : i32, i32
  }
  func.func @transform_4(%arg0: i32) -> (i32, i32) {
    %c0_i32 = arith.constant 0 : i32
    %c0_i32_0 = arith.constant 0 : i32
    %c0_i32_1 = arith.constant 0 : i32
    return %c0_i32, %c0_i32_0 : i32, i32
  }
  func.func @transform_5(%arg0: i32) -> (i32, i32) {
    %c0_i32 = arith.constant 0 : i32
    %c0_i32_0 = arith.constant 0 : i32
    %c0_i32_1 = arith.constant 0 : i32
    return %c0_i32, %c0_i32_0 : i32, i32
  }
  func.func @transform_6(%arg0: i32) -> (i32, i32) {
    %c0_i32 = arith.constant 0 : i32
    %c0_i32_0 = arith.constant 0 : i32
    %c0_i32_1 = arith.constant 0 : i32
    return %c0_i32, %c0_i32_0 : i32, i32
  }
  func.func @transform_7(%arg0: i32) -> (i32, i32) {
    %c0_i32 = arith.constant 0 : i32
    %c0_i32_0 = arith.constant 0 : i32
    return %arg0, %c0_i32 : i32, i32
  }
}

</mosaic_0001>

<llo_original>
// kernel: tpu_custom_call.1
$region0: #{tpu_custom_call.1}
  #allocation0 [shape = 'u32[]', space=smem, size = 0x4, offset = 0x4, fixed_abs, tag = 'smem constant byte address 0x4 - core index']
  #allocation1 [shape = 'u32[144,128]{1,0:T(1,128)}', space=vmem, size = 0x12000, scoped, tag = 'internal scratch']
  %s0 = inlined_call_operand.hbm [shape: f32[24,32], index: 0, kind: input, shape index: {}]
  %s1 = inlined_call_operand.hbm [shape: bf16[32,128], index: 1, kind: input, shape index: {}]
  %s2 = inlined_call_operand.vmem [shape: f32[1,128], index: 2, kind: input, shape index: {}]
  %s3 = inlined_call_operand.hbm [shape: bf16[128,128], index: 3, kind: input, shape index: {}]
  %s4 = inlined_call_operand.vmem [shape: f32[1,128], index: 4, kind: input, shape index: {}]
  %s5 = inlined_call_operand.hbm [shape: bf16[128,128], index: 5, kind: input, shape index: {}]
  %s6 = inlined_call_operand.vmem [shape: f32[1,128], index: 6, kind: input, shape index: {}]
  %s7 = inlined_call_operand.hbm [shape: f32[24,128], index: 7, kind: output, shape index: {}]
  %s8 = sld [smem:[#allocation0]]
  $region54: #{tpu_custom_call.1} parent=0
    _
  %s10 = ssub.s32 1, %s8
  %s11 = scalar_select 0, %s10, %s8
  $region1: #{tpu_custom_call.1} parent=0
    #allocation2 [shape = 'u8[12288]{0}', space=vmem, size = 0x3000, scoped, tag = 'input window, operand 0, single buffered']
    #allocation3 [shape = 's32[1]{0}', space=sflag, size = 0x4, scoped, tag = 'scoped memory for tpu_custom_call.1']
    #allocation4 [shape = 's32[1]{0}', space=sflag, size = 0x4, scoped, tag = 'scoped memory for tpu_custom_call.1']
    #allocation5 [shape = 'u8[8192]{0}', space=vmem, size = 0x2000, scoped, tag = 'input window, operand 1, single buffered']
    #allocation6 [shape = 's32[1]{0}', space=sflag, size = 0x4, scoped, tag = 'scoped memory for tpu_custom_call.1']
    #allocation7 [shape = 'u8[32768]{0}', space=vmem, size = 0x8000, scoped, tag = 'input window, operand 3, single buffered']
    #allocation8 [shape = 'u8[32768]{0}', space=vmem, size = 0x8000, scoped, tag = 'input window, operand 5, single buffered']
    #allocation9 [shape = 's32[1]{0}', space=sflag, size = 0x4, scoped, tag = 'scoped memory for tpu_custom_call.1']
    #allocation10 [shape = 'u8[12288]{0}', space=vmem, size = 0x3000, scoped, tag = 'output window, operand 0, single buffered']
    %12 = vsyncpa [#allocation3], 0
    %13 = vsyncpa [#allocation6], 0
    %14 = vsyncpa [#allocation9], 0
    %15 = vsyncpa [#allocation4], 0
    // Predicated region
    $region2: #{tpu_custom_call.1} parent=1 // pred_check
      _
    $region3: #{tpu_custom_call.1} parent=1 // pred_check_branch
      %17 = sbr.rel (0) target = $region5
    $region4: #{tpu_custom_call.1} parent=1 // pred_region
      %s19 = ssub.s32 384, 384
      %20 = vsyncadd [#allocation3], %s19
      %s21 = sshll.u32 [#allocation2], 4
      %s22 = int_to_ptr.vmem [resolvable:$true] %s21
      %27 = dma.hbm_to_vmem [thread:$0]  %s0, 384, %s22, [#allocation3], 128, 128, 8
    $region5: #{tpu_custom_call.1} parent=1 // pred_fallthru
      _
    // Predicated region
    $region6: #{tpu_custom_call.1} parent=1 // pred_check
      _
    $region7: #{tpu_custom_call.1} parent=1 // pred_check_branch
      %29 = sbr.rel (0) target = $region9
    $region8: #{tpu_custom_call.1} parent=1 // pred_region
      %s31 = ssub.s32 256, 256
      %32 = vsyncadd [#allocation6], %s31
      %s33 = sshll.u32 [#allocation5], 4
      %s34 = int_to_ptr.vmem [resolvable:$true] %s33
      %39 = dma.hbm_to_vmem [thread:$0]  %s1, 256, %s34, [#allocation6], 64, 64, 4
    $region9: #{tpu_custom_call.1} parent=1 // pred_fallthru
      _
    // Predicated region
    $region10: #{tpu_custom_call.1} parent=1 // pred_check
      _
    $region11: #{tpu_custom_call.1} parent=1 // pred_check_branch
      %41 = sbr.rel (0) target = $region13
    $region12: #{tpu_custom_call.1} parent=1 // pred_region
      _
    $region13: #{tpu_custom_call.1} parent=1 // pred_fallthru
      _
    // Predicated region
    $region14: #{tpu_custom_call.1} parent=1 // pred_check
      _
    $region15: #{tpu_custom_call.1} parent=1 // pred_check_branch
      %43 = sbr.rel (0) target = $region17
    $region16: #{tpu_custom_call.1} parent=1 // pred_region
      %s45 = ssub.s32 1024, 1024
      %46 = vsyncadd [#allocation6], %s45
      %s47 = sshll.u32 [#allocation7], 4
      %s48 = int_to_ptr.vmem [resolvable:$true] %s47
      %53 = dma.hbm_to_vmem [thread:$0]  %s3, 1024, %s48, [#allocation6], 64, 64, 4
    $region17: #{tpu_custom_call.1} parent=1 // pred_fallthru
      _
    // Predicated region
    $region18: #{tpu_custom_call.1} parent=1 // pred_check
      _
    $region19: #{tpu_custom_call.1} parent=1 // pred_check_branch
      %55 = sbr.rel (0) target = $region21
    $region20: #{tpu_custom_call.1} parent=1 // pred_region
      _
    $region21: #{tpu_custom_call.1} parent=1 // pred_fallthru
      _
    // Predicated region
    $region22: #{tpu_custom_call.1} parent=1 // pred_check
      _
    $region23: #{tpu_custom_call.1} parent=1 // pred_check_branch
      %57 = sbr.rel (0) target = $region25
    $region24: #{tpu_custom_call.1} parent=1 // pred_region
      %s59 = ssub.s32 1024, 1024
      %60 = vsyncadd [#allocation9], %s59
      %s61 = sshll.u32 [#allocation8], 4
      %s62 = int_to_ptr.vmem [resolvable:$true] %s61
      %67 = dma.hbm_to_vmem [thread:$0]  %s5, 1024, %s62, [#allocation9], 64, 64, 4
    $region25: #{tpu_custom_call.1} parent=1 // pred_fallthru
      _
    // Predicated region
    $region26: #{tpu_custom_call.1} parent=1 // pred_check
      _
    $region27: #{tpu_custom_call.1} parent=1 // pred_check_branch
      %69 = sbr.rel (0) target = $region29
    $region28: #{tpu_custom_call.1} parent=1 // pred_region
      _
    $region29: #{tpu_custom_call.1} parent=1 // pred_fallthru
      _
    // Predicated region
    $region30: #{tpu_custom_call.1} parent=1 // pred_check
      _
    $region31: #{tpu_custom_call.1} parent=1 // pred_check_branch
      %71 = sbr.rel (0) target = $region33
    $region32: #{tpu_custom_call.1} parent=1 // pred_region
      %72 = dma.done [#allocation3], 384
    $region33: #{tpu_custom_call.1} parent=1 // pred_fallthru
      _
    // Predicated region
    $region34: #{tpu_custom_call.1} parent=1 // pred_check
      _
    $region35: #{tpu_custom_call.1} parent=1 // pred_check_branch
      %74 = sbr.rel (0) target = $region37
    $region36: #{tpu_custom_call.1} parent=1 // pred_region
      %75 = dma.done [#allocation6], 256
    $region37: #{tpu_custom_call.1} parent=1 // pred_fallthru
      _
    // Predicated region
    $region38: #{tpu_custom_call.1} parent=1 // pred_check
      _
    $region39: #{tpu_custom_call.1} parent=1 // pred_check_branch
      %77 = sbr.rel (0) target = $region41
    $region40: #{tpu_custom_call.1} parent=1 // pred_region
      %78 = dma.done [#allocation6], 1024
    $region41: #{tpu_custom_call.1} parent=1 // pred_fallthru
      _
    // Predicated region
    $region42: #{tpu_custom_call.1} parent=1 // pred_check
      _
    $region43: #{tpu_custom_call.1} parent=1 // pred_check_branch
      %80 = sbr.rel (0) target = $region45
    $region44: #{tpu_custom_call.1} parent=1 // pred_region
      %81 = dma.done [#allocation9], 1024
    $region45: #{tpu_custom_call.1} parent=1 // pred_fallthru
      _
    %v83 = vld [vmem:[#allocation2] sm:$0xff]
    %v84 = vld [vmem:[#allocation2 + $0x8] sm:$0xff]
    %v85 = vld [vmem:[#allocation2 + $0x10] sm:$0xff]
    %v86 = vpack.c.bf16 %v84, %v83
    %v87 = vpack.c.bf16 %v85, %v85
    %v88 = vld [vmem:[#allocation5] sm:$0xf]
    %v89 = vld [vmem:[#allocation5 + $0x4] sm:$0xf]
    %v90 = vld [vmem:[#allocation5 + $0x8] sm:$0xf]
    %v91 = vld [vmem:[#allocation5 + $0xc] sm:$0xf]
    %v92 = vld [vmem:[%s2] sm:$0x1]
    %v94 = vlaneseq
    %v95 = vshrl.u32 %v94, 7
    %v96 = vsub.s32 0, %v95
    %v97 = vrot.slane %v92, %v96
    %v103 = vunpack.c.l.b16 %v88
    %v104 = vunpack.c.l.b16 %v89
    %v105 = vunpack.c.l.b16 %v90
    %v106 = vunpack.c.l.b16 %v91
    %v107 = vpack.c.b16 %v104, %v103
    %v108 = vpack.c.b16 %v106, %v105
    %vm111 = vcmask 261120
    %v113 = vsel %vm111, %v86, 0
    %v116 = vsel %vm111, %v87, 0
    %118 = vmatprep.subr.bf16.mxu0 0
    %119 = vmatpush1.bf16.msra.mxu0 0
    %120 = vmatprep.subr.bf16.mxu0 0
    %121 = vmatpush1.bf16.msra.mxu0 0
    %122 = vmatprep.subr.bf16.mxu0 0
    %123 = vmatpush1.bf16.msra.mxu0 0
    %124 = vmatprep.subr.bf16.mxu0 0
    %125 = vmatpush1.bf16.msra.mxu0 0
    %126 = vmatprep.subr.bf16.mxu0 0
    %127 = vmatpush1.bf16.msra.mxu0 0
    %128 = vmatprep.subr.bf16.mxu0 0
    %129 = vmatpush1.bf16.msra.mxu0 0
    %130 = vmatprep.subr.bf16.mxu0 0
    %131 = vmatpush1.bf16.msra.mxu0 %v108
    %132 = vmatprep.subr.bf16.mxu0 0
    %133 = vmatpush1.bf16.msra.mxu0 %v107
    %134 = vmatprep.subr.bf16.mxu0 0
    %135 = vmatpush2.bf16.msra.mxu0 0
    %136 = vmatprep.subr.bf16.mxu0 0
    %137 = vmatpush2.bf16.msra.mxu0 0
    %138 = vmatprep.subr.bf16.mxu0 0
    %139 = vmatpush2.bf16.msra.mxu0 0
    %140 = vmatprep.subr.bf16.mxu0 0
    %141 = vmatpush2.bf16.msra.mxu0 0
    %142 = vmatprep.subr.bf16.mxu0 0
    %143 = vmatpush2.bf16.msra.mxu0 0
    %144 = vmatprep.subr.bf16.mxu0 0
    %145 = vmatpush2.bf16.msra.mxu0 0
    %146 = vmatprep.subr.bf16.mxu0 0
    %147 = vmatpush2.bf16.msra.mxu0 0
    %148 = vmatprep.subr.bf16.mxu0 0
    %149 = vmatpush2.bf16.msra.mxu0 0
    %150 = vmatprep.mubr.bf16.mxu0 0
    %151 = vmatmul.mubr.bf16.gmra.mxu0 %v113
    %v152 = vpop.f32.mrf.mxu0
    %v153 = vadd.f32 %v97, %v152
    %v154 = vpop.f32.mrf.mxu0
    %v155 = vpop.f32.mrf.mxu0
    %v156 = vadd.f32 %v97, %v155
    %v157 = vpop.f32.mrf.mxu0
    %158 = vmatprep.mubr.bf16.mxu0 0
    %159 = vmatmul.mubr.bf16.gmra.mxu0 %v116
    %v160 = vpop.f32.mrf.mxu0
    %v161 = vadd.f32 %v97, %v160
    %v162 = vpop.f32.mrf.mxu0
    %v163 = vpop.f32.mrf.mxu0
    %v164 = vpop.f32.mrf.mxu0
    %165 = vdwg.mxu0
    %v166 = vmul.f32 %v153, 0.2
    %v167 = vmul.f32 %v156, 0.2
    %v168 = vmul.f32 %v161, 0.2
    %v169 = vmax.f32 %v153, %v166
    %v170 = vmax.f32 %v156, %v167
    %v171 = vmax.f32 %v161, %v168
    %v172 = vpack.c.bf16 %v170, %v169
    %v173 = vpack.c.bf16 %v171, %v171
    %v174 = vld [vmem:[#allocation7] sm:$0xf]
    %v175 = vld [vmem:[#allocation7 + $0x4] sm:$0xf]
    %v176 = vld [vmem:[#allocation7 + $0x8] sm:$0xf]
    %v177 = vld [vmem:[#allocation7 + $0xc] sm:$0xf]
    %v178 = vld [vmem:[#allocation7 + $0x10] sm:$0xf]
    %v179 = vld [vmem:[#allocation7 + $0x14] sm:$0xf]
    %v180 = vld [vmem:[#allocation7 + $0x18] sm:$0xf]
    %v181 = vld [vmem:[#allocation7 + $0x1c] sm:$0xf]
    %v182 = vld [vmem:[#allocation7 + $0x20] sm:$0xf]
    %v183 = vld [vmem:[#allocation7 + $0x24] sm:$0xf]
    %v184 = vld [vmem:[#allocation7 + $0x28] sm:$0xf]
    %v185 = vld [vmem:[#allocation7 + $0x2c] sm:$0xf]
    %v186 = vld [vmem:[#allocation7 + $0x30] sm:$0xf]
    %v187 = vld [vmem:[#allocation7 + $0x34] sm:$0xf]
    %v188 = vld [vmem:[#allocation7 + $0x38] sm:$0xf]
    %v189 = vld [vmem:[#allocation7 + $0x3c] sm:$0xf]
    %v190 = vld [vmem:[%s4] sm:$0x1]
    %v192 = vlaneseq
    %v193 = vshrl.u32 %v192, 7
    %v194 = vsub.s32 0, %v193
    %v195 = vrot.slane %v190, %v194
    %v213 = vunpack.c.l.b16 %v174
    %v214 = vunpack.c.l.b16 %v175
    %v215 = vunpack.c.l.b16 %v176
    %v216 = vunpack.c.l.b16 %v177
    %v217 = vunpack.c.l.b16 %v178
    %v218 = vunpack.c.l.b16 %v179
    %v219 = vunpack.c.l.b16 %v180
    %v220 = vunpack.c.l.b16 %v181
    %v221 = vunpack.c.l.b16 %v182
    %v222 = vunpack.c.l.b16 %v183
    %v223 = vunpack.c.l.b16 %v184
    %v224 = vunpack.c.l.b16 %v185
    %v225 = vunpack.c.l.b16 %v186
    %v226 = vunpack.c.l.b16 %v187
    %v227 = vunpack.c.l.b16 %v188
    %v228 = vunpack.c.l.b16 %v189
    %v229 = vpack.c.b16 %v214, %v213
    %v230 = vpack.c.b16 %v216, %v215
    %v231 = vpack.c.b16 %v218, %v217
    %v232 = vpack.c.b16 %v220, %v219
    %v233 = vpack.c.b16 %v222, %v221
    %v234 = vpack.c.b16 %v224, %v223
    %v235 = vpack.c.b16 %v226, %v225
    %v236 = vpack.c.b16 %v228, %v227
    %245 = vmatprep.subr.bf16.mxu0 0
    %246 = vmatpush1.bf16.msra.mxu0 %v236
    %247 = vmatprep.subr.bf16.mxu0 0
    %248 = vmatpush1.bf16.msra.mxu0 %v235
    %249 = vmatprep.subr.bf16.mxu0 0
    %250 = vmatpush1.bf16.msra.mxu0 %v234
    %251 = vmatprep.subr.bf16.mxu0 0
    %252 = vmatpush1.bf16.msra.mxu0 %v233
    %253 = vmatprep.subr.bf16.mxu0 0
    %254 = vmatpush1.bf16.msra.mxu0 %v232
    %255 = vmatprep.subr.bf16.mxu0 0
    %256 = vmatpush1.bf16.msra.mxu0 %v231
    %257 = vmatprep.subr.bf16.mxu0 0
    %258 = vmatpush1.bf16.msra.mxu0 %v230
    %259 = vmatprep.subr.bf16.mxu0 0
    %260 = vmatpush1.bf16.msra.mxu0 %v229
    %261 = vmatprep.subr.bf16.mxu0 0
    %262 = vmatpush2.bf16.msra.mxu0 0
    %263 = vmatprep.subr.bf16.mxu0 0
    %264 = vmatpush2.bf16.msra.mxu0 0
    %265 = vmatprep.subr.bf16.mxu0 0
    %266 = vmatpush2.bf16.msra.mxu0 0
    %267 = vmatprep.subr.bf16.mxu0 0
    %268 = vmatpush2.bf16.msra.mxu0 0
    %269 = vmatprep.subr.bf16.mxu0 0
    %270 = vmatpush2.bf16.msra.mxu0 0
    %271 = vmatprep.subr.bf16.mxu0 0
    %272 = vmatpush2.bf16.msra.mxu0 0
    %273 = vmatprep.subr.bf16.mxu0 0
    %274 = vmatpush2.bf16.msra.mxu0 0
    %275 = vmatprep.subr.bf16.mxu0 0
    %276 = vmatpush2.bf16.msra.mxu0 0
    %277 = vmatprep.mubr.bf16.mxu0 0
    %278 = vmatmul.mubr.bf16.gmra.mxu0 %v172
    %v279 = vpop.f32.mrf.mxu0
    %v280 = vadd.f32 %v195, %v279
    %v281 = vpop.f32.mrf.mxu0
    %v282 = vpop.f32.mrf.mxu0
    %v283 = vadd.f32 %v195, %v282
    %v284 = vpop.f32.mrf.mxu0
    %285 = vmatprep.mubr.bf16.mxu0 0
    %286 = vmatmul.mubr.bf16.gmra.mxu0 %v173
    %v287 = vpop.f32.mrf.mxu0
    %v288 = vadd.f32 %v195, %v287
    %v289 = vpop.f32.mrf.mxu0
    %v290 = vpop.f32.mrf.mxu0
    %v291 = vpop.f32.mrf.mxu0
    %292 = vdwg.mxu0
    %v293 = vmul.f32 %v280, 0.2
    %v294 = vmul.f32 %v283, 0.2
    %v295 = vmul.f32 %v288, 0.2
    %v296 = vmax.f32 %v280, %v293
    %v297 = vmax.f32 %v283, %v294
    %v298 = vmax.f32 %v288, %v295
    %v299 = vpack.c.bf16 %v297, %v296
    %v300 = vpack.c.bf16 %v298, %v298
    %v301 = vld [vmem:[#allocation8] sm:$0xf]
    %v302 = vld [vmem:[#allocation8 + $0x4] sm:$0xf]
    %v303 = vld [vmem:[#allocation8 + $0x8] sm:$0xf]
    %v304 = vld [vmem:[#allocation8 + $0xc] sm:$0xf]
    %v305 = vld [vmem:[#allocation8 + $0x10] sm:$0xf]
    %v306 = vld [vmem:[#allocation8 + $0x14] sm:$0xf]
    %v307 = vld [vmem:[#allocation8 + $0x18] sm:$0xf]
    %v308 = vld [vmem:[#allocation8 + $0x1c] sm:$0xf]
    %v309 = vld [vmem:[#allocation8 + $0x20] sm:$0xf]
    %v310 = vld [vmem:[#allocation8 + $0x24] sm:$0xf]
    %v311 = vld [vmem:[#allocation8 + $0x28] sm:$0xf]
    %v312 = vld [vmem:[#allocation8 + $0x2c] sm:$0xf]
    %v313 = vld [vmem:[#allocation8 + $0x30] sm:$0xf]
    %v314 = vld [vmem:[#allocation8 + $0x34] sm:$0xf]
    %v315 = vld [vmem:[#allocation8 + $0x38] sm:$0xf]
    %v316 = vld [vmem:[#allocation8 + $0x3c] sm:$0xf]
    %v317 = vld [vmem:[%s6] sm:$0x1]
    %v319 = vlaneseq
    %v320 = vshrl.u32 %v319, 7
    %v321 = vsub.s32 0, %v320
    %v322 = vrot.slane %v317, %v321
    %v340 = vunpack.c.l.b16 %v301
    %v341 = vunpack.c.l.b16 %v302
    %v342 = vunpack.c.l.b16 %v303
    %v343 = vunpack.c.l.b16 %v304
    %v344 = vunpack.c.l.b16 %v305
    %v345 = vunpack.c.l.b16 %v306
    %v346 = vunpack.c.l.b16 %v307
    %v347 = vunpack.c.l.b16 %v308
    %v348 = vunpack.c.l.b16 %v309
    %v349 = vunpack.c.l.b16 %v310
    %v350 = vunpack.c.l.b16 %v311
    %v351 = vunpack.c.l.b16 %v312
    %v352 = vunpack.c.l.b16 %v313
    %v353 = vunpack.c.l.b16 %v314
    %v354 = vunpack.c.l.b16 %v315
    %v355 = vunpack.c.l.b16 %v316
    %v356 = vpack.c.b16 %v341, %v340
    %v357 = vpack.c.b16 %v343, %v342
    %v358 = vpack.c.b16 %v345, %v344
    %v359 = vpack.c.b16 %v347, %v346
    %v360 = vpack.c.b16 %v349, %v348
    %v361 = vpack.c.b16 %v351, %v350
    %v362 = vpack.c.b16 %v353, %v352
    %v363 = vpack.c.b16 %v355, %v354
    %372 = vmatprep.subr.bf16.mxu0 0
    %373 = vmatpush1.bf16.msra.mxu0 %v363
    %374 = vmatprep.subr.bf16.mxu0 0
    %375 = vmatpush1.bf16.msra.mxu0 %v362
    %376 = vmatprep.subr.bf16.mxu0 0
    %377 = vmatpush1.bf16.msra.mxu0 %v361
    %378 = vmatprep.subr.bf16.mxu0 0
    %379 = vmatpush1.bf16.msra.mxu0 %v360
    %380 = vmatprep.subr.bf16.mxu0 0
    %381 = vmatpush1.bf16.msra.mxu0 %v359
    %382 = vmatprep.subr.bf16.mxu0 0
    %383 = vmatpush1.bf16.msra.mxu0 %v358
    %384 = vmatprep.subr.bf16.mxu0 0
    %385 = vmatpush1.bf16.msra.mxu0 %v357
    %386 = vmatprep.subr.bf16.mxu0 0
    %387 = vmatpush1.bf16.msra.mxu0 %v356
    %388 = vmatprep.subr.bf16.mxu0 0
    %389 = vmatpush2.bf16.msra.mxu0 0
    %390 = vmatprep.subr.bf16.mxu0 0
    %391 = vmatpush2.bf16.msra.mxu0 0
    %392 = vmatprep.subr.bf16.mxu0 0
    %393 = vmatpush2.bf16.msra.mxu0 0
    %394 = vmatprep.subr.bf16.mxu0 0
    %395 = vmatpush2.bf16.msra.mxu0 0
    %396 = vmatprep.subr.bf16.mxu0 0
    %397 = vmatpush2.bf16.msra.mxu0 0
    %398 = vmatprep.subr.bf16.mxu0 0
    %399 = vmatpush2.bf16.msra.mxu0 0
    %400 = vmatprep.subr.bf16.mxu0 0
    %401 = vmatpush2.bf16.msra.mxu0 0
    %402 = vmatprep.subr.bf16.mxu0 0
    %403 = vmatpush2.bf16.msra.mxu0 0
    %404 = vmatprep.mubr.bf16.mxu0 0
    %405 = vmatmul.mubr.bf16.gmra.mxu0 %v299
    %v406 = vpop.f32.mrf.mxu0
    %v407 = vadd.f32 %v322, %v406
    %v408 = vpop.f32.mrf.mxu0
    %v409 = vpop.f32.mrf.mxu0
    %v410 = vadd.f32 %v322, %v409
    %v411 = vpop.f32.mrf.mxu0
    %412 = vmatprep.mubr.bf16.mxu0 0
    %413 = vmatmul.mubr.bf16.gmra.mxu0 %v300
    %v414 = vpop.f32.mrf.mxu0
    %v415 = vadd.f32 %v322, %v414
    %v416 = vpop.f32.mrf.mxu0
    %v417 = vpop.f32.mrf.mxu0
    %v418 = vpop.f32.mrf.mxu0
    %419 = vdwg.mxu0
    %v420 = vlaneseq
    %v421 = vand.u32 %v420, 127
    %vm422 = vcmp.eq.s32.totalorder %v421, 0
    %v423 = vxor.u32 %v407, 2147483648
    %v424 = vxor.u32 %v410, 2147483648
    %v425 = vxor.u32 %v415, 2147483648
    %v426 = vmul.f32 %v423, 1.442695
    %v427 = vpow.pop %v426
    %v428 = vmul.f32 %v424, 1.442695
    %v429 = vpow.pop %v428
    %v430 = vmul.f32 %v425, 1.442695
    %v431 = vpow.pop %v430
    %v432 = vadd.f32 %v427, 1.0
    %v433 = vadd.f32 %v429, 1.0
    %v434 = vadd.f32 %v431, 1.0
    %v435 = vrcp.pop %v432
    %v436 = vmul.f32 1.0, %v435
    %v437 = vrcp.pop %v433
    %v438 = vmul.f32 1.0, %v437
    %v439 = vrcp.pop %v434
    %v440 = vmul.f32 1.0, %v439
    %v441 = vsel %vm422, %v436, %v407
    %v442 = vsel %vm422, %v438, %v410
    %v443 = vsel %vm422, %v440, %v415
    %444 = vst [vmem:[#allocation10] sm:$0xff] %v441
    %445 = vst [vmem:[#allocation10 + $0x8] sm:$0xff] %v442
    %446 = vst [vmem:[#allocation10 + $0x10] sm:$0xff] %v443
    // Predicated region
    $region46: #{tpu_custom_call.1} parent=1 // pred_check
      _
    $region47: #{tpu_custom_call.1} parent=1 // pred_check_branch
      %448 = sbr.rel (0) target = $region49
    $region48: #{tpu_custom_call.1} parent=1 // pred_region
      %s450 = ssub.s32 384, 384
      %451 = vsyncadd [#allocation4], %s450
      %s452 = sshll.u32 [#allocation10], 4
      %s453 = int_to_ptr.vmem [resolvable:$true] %s452
      %458 = dma.vmem_to_hbm [thread:$0]  %s453, 384, %s7, [#allocation4], 128, 128, 8
    $region49: #{tpu_custom_call.1} parent=1 // pred_fallthru
      _
    // Predicated region
    $region50: #{tpu_custom_call.1} parent=1 // pred_check
      _
    $region51: #{tpu_custom_call.1} parent=1 // pred_check_branch
      %460 = sbr.rel (0) target = $region53
    $region52: #{tpu_custom_call.1} parent=1 // pred_region
      %461 = dma.done [#allocation4], 384
    $region53: #{tpu_custom_call.1} parent=1 // pred_fallthru
      _
    %462 = vsyncpa [#allocation3], 1
    %463 = vsyncpa [#allocation6], 1
    %464 = vsyncpa [#allocation9], 1
    %465 = vsyncpa [#allocation4], 1

// kernel: tpu_custom_call.1
$region0: #{tpu_custom_call.1}
  #allocation0 [shape = 'u32[]', space=smem, size = 0x4, offset = 0x4, fixed_abs, tag = 'smem constant byte address 0x4 - core index']
  #allocation1 [shape = 'u32[144,128]{1,0:T(1,128)}', space=vmem, size = 0x12000, scoped, tag = 'internal scratch']
  %s0 = inlined_call_operand.hbm [shape: f32[24,32], index: 0, kind: input, shape index: {}]
  %s1 = inlined_call_operand.hbm [shape: bf16[32,128], index: 1, kind: input, shape index: {}]
  %s2 = inlined_call_operand.vmem [shape: f32[1,128], index: 2, kind: input, shape index: {}]
  %s3 = inlined_call_operand.hbm [shape: bf16[128,128], index: 3, kind: input, shape index: {}]
  %s4 = inlined_call_operand.vmem [shape: f32[1,128], index: 4, kind: input, shape index: {}]
  %s5 = inlined_call_operand.hbm [shape: bf16[128,128], index: 5, kind: input, shape index: {}]
  %s6 = inlined_call_operand.vmem [shape: f32[1,128], index: 6, kind: input, shape index: {}]
  %s7 = inlined_call_operand.hbm [shape: f32[24,128], index: 7, kind: output, shape index: {}]
  %s8 = sld [smem:[#allocation0]]
  $region54: #{tpu_custom_call.1} parent=0
    _
  %s10 = ssub.s32 1, %s8
  %s11 = scalar_select 0, %s10, %s8
  $region1: #{tpu_custom_call.1} parent=0
    #allocation2 [shape = 'u8[12288]{0}', space=vmem, size = 0x3000, scoped, tag = 'input window, operand 0, single buffered']
    #allocation3 [shape = 's32[1]{0}', space=sflag, size = 0x4, scoped, tag = 'scoped memory for tpu_custom_call.1']
    #allocation4 [shape = 's32[1]{0}', space=sflag, size = 0x4, scoped, tag = 'scoped memory for tpu_custom_call.1']
    #allocation5 [shape = 'u8[8192]{0}', space=vmem, size = 0x2000, scoped, tag = 'input window, operand 1, single buffered']
    #allocation6 [shape = 's32[1]{0}', space=sflag, size = 0x4, scoped, tag = 'scoped memory for tpu_custom_call.1']
    #allocation7 [shape = 'u8[32768]{0}', space=vmem, size = 0x8000, scoped, tag = 'input window, operand 3, single buffered']
    #allocation8 [shape = 'u8[32768]{0}', space=vmem, size = 0x8000, scoped, tag = 'input window, operand 5, single buffered']
    #allocation9 [shape = 's32[1]{0}', space=sflag, size = 0x4, scoped, tag = 'scoped memory for tpu_custom_call.1']
    #allocation10 [shape = 'u8[12288]{0}', space=vmem, size = 0x3000, scoped, tag = 'output window, operand 0, single buffered']
    %12 = vsyncpa [#allocation3], 0
    %13 = vsyncpa [#allocation6], 0
    %14 = vsyncpa [#allocation9], 0
    %15 = vsyncpa [#allocation4], 0
    // Predicated region
    $region2: #{tpu_custom_call.1} parent=1 // pred_check
      _
    $region3: #{tpu_custom_call.1} parent=1 // pred_check_branch
      %17 = sbr.rel (0) target = $region5
    $region4: #{tpu_custom_call.1} parent=1 // pred_region
      %s19 = ssub.s32 384, 384
      %20 = vsyncadd [#allocation3], %s19
      %s21 = sshll.u32 [#allocation2], 4
      %s22 = int_to_ptr.vmem [resolvable:$true] %s21
      %27 = dma.hbm_to_vmem [thread:$0]  %s0, 384, %s22, [#allocation3], 128, 128, 8
    $region5: #{tpu_custom_call.1} parent=1 // pred_fallthru
      _
    // Predicated region
    $region6: #{tpu_custom_call.1} parent=1 // pred_check
      _
    $region7: #{tpu_custom_call.1} parent=1 // pred_check_branch
      %29 = sbr.rel (0) target = $region9
    $region8: #{tpu_custom_call.1} parent=1 // pred_region
      %s31 = ssub.s32 256, 256
      %32 = vsyncadd [#allocation6], %s31
      %s33 = sshll.u32 [#allocation5], 4
      %s34 = int_to_ptr.vmem [resolvable:$true] %s33
      %39 = dma.hbm_to_vmem [thread:$0]  %s1, 256, %s34, [#allocation6], 64, 64, 4
    $region9: #{tpu_custom_call.1} parent=1 // pred_fallthru
      _
    // Predicated region
    $region10: #{tpu_custom_call.1} parent=1 // pred_check
      _
    $region11: #{tpu_custom_call.1} parent=1 // pred_check_branch
      %41 = sbr.rel (0) target = $region13
    $region12: #{tpu_custom_call.1} parent=1 // pred_region
      _
    $region13: #{tpu_custom_call.1} parent=1 // pred_fallthru
      _
    // Predicated region
    $region14: #{tpu_custom_call.1} parent=1 // pred_check
      _
    $region15: #{tpu_custom_call.1} parent=1 // pred_check_branch
      %43 = sbr.rel (0) target = $region17
    $region16: #{tpu_custom_call.1} parent=1 // pred_region
      %s45 = ssub.s32 1024, 1024
      %46 = vsyncadd [#allocation6], %s45
      %s47 = sshll.u32 [#allocation7], 4
      %s48 = int_to_ptr.vmem [resolvable:$true] %s47
      %53 = dma.hbm_to_vmem [thread:$0]  %s3, 1024, %s48, [#allocation6], 64, 64, 4
    $region17: #{tpu_custom_call.1} parent=1 // pred_fallthru
      _
    // Predicated region
    $region18: #{tpu_custom_call.1} parent=1 // pred_check
      _
    $region19: #{tpu_custom_call.1} parent=1 // pred_check_branch
      %55 = sbr.rel (0) target = $region21
    $region20: #{tpu_custom_call.1} parent=1 // pred_region
      _
    $region21: #{tpu_custom_call.1} parent=1 // pred_fallthru
      _
    // Predicated region
    $region22: #{tpu_custom_call.1} parent=1 // pred_check
      _
    $region23: #{tpu_custom_call.1} parent=1 // pred_check_branch
      %57 = sbr.rel (0) target = $region25
    $region24: #{tpu_custom_call.1} parent=1 // pred_region
      %s59 = ssub.s32 1024, 1024
      %60 = vsyncadd [#allocation9], %s59
      %s61 = sshll.u32 [#allocation8], 4
      %s62 = int_to_ptr.vmem [resolvable:$true] %s61
      %67 = dma.hbm_to_vmem [thread:$0]  %s5, 1024, %s62, [#allocation9], 64, 64, 4
    $region25: #{tpu_custom_call.1} parent=1 // pred_fallthru
      _
    // Predicated region
    $region26: #{tpu_custom_call.1} parent=1 // pred_check
      _
    $region27: #{tpu_custom_call.1} parent=1 // pred_check_branch
      %69 = sbr.rel (0) target = $region29
    $region28: #{tpu_custom_call.1} parent=1 // pred_region
      _
    $region29: #{tpu_custom_call.1} parent=1 // pred_fallthru
      _
    // Predicated region
    $region30: #{tpu_custom_call.1} parent=1 // pred_check
      _
    $region31: #{tpu_custom_call.1} parent=1 // pred_check_branch
      %71 = sbr.rel (0) target = $region33
    $region32: #{tpu_custom_call.1} parent=1 // pred_region
      %72 = dma.done [#allocation3], 384
    $region33: #{tpu_custom_call.1} parent=1 // pred_fallthru
      _
    // Predicated region
    $region34: #{tpu_custom_call.1} parent=1 // pred_check
      _
    $region35: #{tpu_custom_call.1} parent=1 // pred_check_branch
      %74 = sbr.rel (0) target = $region37
    $region36: #{tpu_custom_call.1} parent=1 // pred_region
      %75 = dma.done [#allocation6], 256
    $region37: #{tpu_custom_call.1} parent=1 // pred_fallthru
      _
    // Predicated region
    $region38: #{tpu_custom_call.1} parent=1 // pred_check
      _
    $region39: #{tpu_custom_call.1} parent=1 // pred_check_branch
      %77 = sbr.rel (0) target = $region41
    $region40: #{tpu_custom_call.1} parent=1 // pred_region
      %78 = dma.done [#allocation6], 1024
    $region41: #{tpu_custom_call.1} parent=1 // pred_fallthru
      _
    // Predicated region
    $region42: #{tpu_custom_call.1} parent=1 // pred_check
      _
    $region43: #{tpu_custom_call.1} parent=1 // pred_check_branch
      %80 = sbr.rel (0) target = $region45
    $region44: #{tpu_custom_call.1} parent=1 // pred_region
      %81 = dma.done [#allocation9], 1024
    $region45: #{tpu_custom_call.1} parent=1 // pred_fallthru
      _
    %v83 = vld [vmem:[#allocation2] sm:$0xff]
    %v84 = vld [vmem:[#allocation2 + $0x8] sm:$0xff]
    %v85 = vld [vmem:[#allocation2 + $0x10] sm:$0xff]
    %v86 = vpack.c.bf16 %v84, %v83
    %v87 = vpack.c.bf16 %v85, %v85
    %v88 = vld [vmem:[#allocation5] sm:$0xf]
    %v89 = vld [vmem:[#allocation5 + $0x4] sm:$0xf]
    %v90 = vld [vmem:[#allocation5 + $0x8] sm:$0xf]
    %v91 = vld [vmem:[#allocation5 + $0xc] sm:$0xf]
    %v92 = vld [vmem:[%s2] sm:$0x1]
    %v94 = vlaneseq
    %v95 = vshrl.u32 %v94, 7
    %v96 = vsub.s32 0, %v95
    %v97 = vrot.slane %v92, %v96
    %v103 = vunpack.c.l.b16 %v88
    %v104 = vunpack.c.l.b16 %v89
    %v105 = vunpack.c.l.b16 %v90
    %v106 = vunpack.c.l.b16 %v91
    %v107 = vpack.c.b16 %v104, %v103
    %v108 = vpack.c.b16 %v106, %v105
    %vm111 = vcmask 261120
    %v113 = vsel %vm111, %v86, 0
    %v116 = vsel %vm111, %v87, 0
    %118 = vmatprep.subr.bf16.mxu0 0
    %119 = vmatpush1.bf16.msra.mxu0 0
    %120 = vmatprep.subr.bf16.mxu0 0
    %121 = vmatpush1.bf16.msra.mxu0 0
    %122 = vmatprep.subr.bf16.mxu0 0
    %123 = vmatpush1.bf16.msra.mxu0 0
    %124 = vmatprep.subr.bf16.mxu0 0
    %125 = vmatpush1.bf16.msra.mxu0 0
    %126 = vmatprep.subr.bf16.mxu0 0
    %127 = vmatpush1.bf16.msra.mxu0 0
    %128 = vmatprep.subr.bf16.mxu0 0
    %129 = vmatpush1.bf16.msra.mxu0 0
    %130 = vmatprep.subr.bf16.mxu0 0
    %131 = vmatpush1.bf16.msra.mxu0 %v108
    %132 = vmatprep.subr.bf16.mxu0 0
    %133 = vmatpush1.bf16.msra.mxu0 %v107
    %134 = vmatprep.subr.bf16.mxu0 0
    %135 = vmatpush2.bf16.msra.mxu0 0
    %136 = vmatprep.subr.bf16.mxu0 0
    %137 = vmatpush2.bf16.msra.mxu0 0
    %138 = vmatprep.subr.bf16.mxu0 0
    %139 = vmatpush2.bf16.msra.mxu0 0
    %140 = vmatprep.subr.bf16.mxu0 0
    %141 = vmatpush2.bf16.msra.mxu0 0
    %142 = vmatprep.subr.bf16.mxu0 0
    %143 = vmatpush2.bf16.msra.mxu0 0
    %144 = vmatprep.subr.bf16.mxu0 0
    %145 = vmatpush2.bf16.msra.mxu0 0
    %146 = vmatprep.subr.bf16.mxu0 0
    %147 = vmatpush2.bf16.msra.mxu0 0
    %148 = vmatprep.subr.bf16.mxu0 0
    %149 = vmatpush2.bf16.msra.mxu0 0
    %150 = vmatprep.mubr.bf16.mxu0 0
    %151 = vmatmul.mubr.bf16.gmra.mxu0 %v113
    %v152 = vpop.f32.mrf.mxu0
    %v153 = vadd.f32 %v97, %v152
    %v154 = vpop.f32.mrf.mxu0
    %v155 = vpop.f32.mrf.mxu0
    %v156 = vadd.f32 %v97, %v155
    %v157 = vpop.f32.mrf.mxu0
    %158 = vmatprep.mubr.bf16.mxu0 0
    %159 = vmatmul.mubr.bf16.gmra.mxu0 %v116
    %v160 = vpop.f32.mrf.mxu0
    %v161 = vadd.f32 %v97, %v160
    %v162 = vpop.f32.mrf.mxu0
    %v163 = vpop.f32.mrf.mxu0
    %v164 = vpop.f32.mrf.mxu0
    %165 = vdwg.mxu0
    %v166 = vmul.f32 %v153, 0.2
    %v167 = vmul.f32 %v156, 0.2
    %v168 = vmul.f32 %v161, 0.2
    %v169 = vmax.f32 %v153, %v166
    %v170 = vmax.f32 %v156, %v167
    %v171 = vmax.f32 %v161, %v168
    %v172 = vpack.c.bf16 %v170, %v169
    %v173 = vpack.c.bf16 %v171, %v171
    %v174 = vld [vmem:[#allocation7] sm:$0xf]
    %v175 = vld [vmem:[#allocation7 + $0x4] sm:$0xf]
    %v176 = vld [vmem:[#allocation7 + $0x8] sm:$0xf]
    %v177 = vld [vmem:[#allocation7 + $0xc] sm:$0xf]
    %v178 = vld [vmem:[#allocation7 + $0x10] sm:$0xf]
    %v179 = vld [vmem:[#allocation7 + $0x14] sm:$0xf]
    %v180 = vld [vmem:[#allocation7 + $0x18] sm:$0xf]
    %v181 = vld [vmem:[#allocation7 + $0x1c] sm:$0xf]
    %v182 = vld [vmem:[#allocation7 + $0x20] sm:$0xf]
    %v183 = vld [vmem:[#allocation7 + $0x24] sm:$0xf]
    %v184 = vld [vmem:[#allocation7 + $0x28] sm:$0xf]
    %v185 = vld [vmem:[#allocation7 + $0x2c] sm:$0xf]
    %v186 = vld [vmem:[#allocation7 + $0x30] sm:$0xf]
    %v187 = vld [vmem:[#allocation7 + $0x34] sm:$0xf]
    %v188 = vld [vmem:[#allocation7 + $0x38] sm:$0xf]
    %v189 = vld [vmem:[#allocation7 + $0x3c] sm:$0xf]
    %v190 = vld [vmem:[%s4] sm:$0x1]
    %v192 = vlaneseq
    %v193 = vshrl.u32 %v192, 7
    %v194 = vsub.s32 0, %v193
    %v195 = vrot.slane %v190, %v194
    %v213 = vunpack.c.l.b16 %v174
    %v214 = vunpack.c.l.b16 %v175
    %v215 = vunpack.c.l.b16 %v176
    %v216 = vunpack.c.l.b16 %v177
    %v217 = vunpack.c.l.b16 %v178
    %v218 = vunpack.c.l.b16 %v179
    %v219 = vunpack.c.l.b16 %v180
    %v220 = vunpack.c.l.b16 %v181
    %v221 = vunpack.c.l.b16 %v182
    %v222 = vunpack.c.l.b16 %v183
    %v223 = vunpack.c.l.b16 %v184
    %v224 = vunpack.c.l.b16 %v185
    %v225 = vunpack.c.l.b16 %v186
    %v226 = vunpack.c.l.b16 %v187
    %v227 = vunpack.c.l.b16 %v188
    %v228 = vunpack.c.l.b16 %v189
    %v229 = vpack.c.b16 %v214, %v213
    %v230 = vpack.c.b16 %v216, %v215
    %v231 = vpack.c.b16 %v218, %v217
    %v232 = vpack.c.b16 %v220, %v219
    %v233 = vpack.c.b16 %v222, %v221
    %v234 = vpack.c.b16 %v224, %v223
    %v235 = vpack.c.b16 %v226, %v225
    %v236 = vpack.c.b16 %v228, %v227
    %245 = vmatprep.subr.bf16.mxu0 0
    %246 = vmatpush1.bf16.msra.mxu0 %v236
    %247 = vmatprep.subr.bf16.mxu0 0
    %248 = vmatpush1.bf16.msra.mxu0 %v235
    %249 = vmatprep.subr.bf16.mxu0 0
    %250 = vmatpush1.bf16.msra.mxu0 %v234
    %251 = vmatprep.subr.bf16.mxu0 0
    %252 = vmatpush1.bf16.msra.mxu0 %v233
    %253 = vmatprep.subr.bf16.mxu0 0
    %254 = vmatpush1.bf16.msra.mxu0 %v232
    %255 = vmatprep.subr.bf16.mxu0 0
    %256 = vmatpush1.bf16.msra.mxu0 %v231
    %257 = vmatprep.subr.bf16.mxu0 0
    %258 = vmatpush1.bf16.msra.mxu0 %v230
    %259 = vmatprep.subr.bf16.mxu0 0
    %260 = vmatpush1.bf16.msra.mxu0 %v229
    %261 = vmatprep.subr.bf16.mxu0 0
    %262 = vmatpush2.bf16.msra.mxu0 0
    %263 = vmatprep.subr.bf16.mxu0 0
    %264 = vmatpush2.bf16.msra.mxu0 0
    %265 = vmatprep.subr.bf16.mxu0 0
    %266 = vmatpush2.bf16.msra.mxu0 0
    %267 = vmatprep.subr.bf16.mxu0 0
    %268 = vmatpush2.bf16.msra.mxu0 0
    %269 = vmatprep.subr.bf16.mxu0 0
    %270 = vmatpush2.bf16.msra.mxu0 0
    %271 = vmatprep.subr.bf16.mxu0 0
    %272 = vmatpush2.bf16.msra.mxu0 0
    %273 = vmatprep.subr.bf16.mxu0 0
    %274 = vmatpush2.bf16.msra.mxu0 0
    %275 = vmatprep.subr.bf16.mxu0 0
    %276 = vmatpush2.bf16.msra.mxu0 0
    %277 = vmatprep.mubr.bf16.mxu0 0
    %278 = vmatmul.mubr.bf16.gmra.mxu0 %v172
    %v279 = vpop.f32.mrf.mxu0
    %v280 = vadd.f32 %v195, %v279
    %v281 = vpop.f32.mrf.mxu0
    %v282 = vpop.f32.mrf.mxu0
    %v283 = vadd.f32 %v195, %v282
    %v284 = vpop.f32.mrf.mxu0
    %285 = vmatprep.mubr.bf16.mxu0 0
    %286 = vmatmul.mubr.bf16.gmra.mxu0 %v173
    %v287 = vpop.f32.mrf.mxu0
    %v288 = vadd.f32 %v195, %v287
    %v289 = vpop.f32.mrf.mxu0
    %v290 = vpop.f32.mrf.mxu0
    %v291 = vpop.f32.mrf.mxu0
    %292 = vdwg.mxu0
    %v293 = vmul.f32 %v280, 0.2
    %v294 = vmul.f32 %v283, 0.2
    %v295 = vmul.f32 %v288, 0.2
    %v296 = vmax.f32 %v280, %v293
    %v297 = vmax.f32 %v283, %v294
    %v298 = vmax.f32 %v288, %v295
    %v299 = vpack.c.bf16 %v297, %v296
    %v300 = vpack.c.bf16 %v298, %v298
    %v301 = vld [vmem:[#allocation8] sm:$0xf]
    %v302 = vld [vmem:[#allocation8 + $0x4] sm:$0xf]
    %v303 = vld [vmem:[#allocation8 + $0x8] sm:$0xf]
    %v304 = vld [vmem:[#allocation8 + $0xc] sm:$0xf]
    %v305 = vld [vmem:[#allocation8 + $0x10] sm:$0xf]
    %v306 = vld [vmem:[#allocation8 + $0x14] sm:$0xf]
    %v307 = vld [vmem:[#allocation8 + $0x18] sm:$0xf]
    %v308 = vld [vmem:[#allocation8 + $0x1c] sm:$0xf]
    %v309 = vld [vmem:[#allocation8 + $0x20] sm:$0xf]
    %v310 = vld [vmem:[#allocation8 + $0x24] sm:$0xf]
    %v311 = vld [vmem:[#allocation8 + $0x28] sm:$0xf]
    %v312 = vld [vmem:[#allocation8 + $0x2c] sm:$0xf]
    %v313 = vld [vmem:[#allocation8 + $0x30] sm:$0xf]
    %v314 = vld [vmem:[#allocation8 + $0x34] sm:$0xf]
    %v315 = vld [vmem:[#allocation8 + $0x38] sm:$0xf]
    %v316 = vld [vmem:[#allocation8 + $0x3c] sm:$0xf]
    %v317 = vld [vmem:[%s6] sm:$0x1]
    %v319 = vlaneseq
    %v320 = vshrl.u32 %v319, 7
    %v321 = vsub.s32 0, %v320
    %v322 = vrot.slane %v317, %v321
    %v340 = vunpack.c.l.b16 %v301
    %v341 = vunpack.c.l.b16 %v302
    %v342 = vunpack.c.l.b16 %v303
    %v343 = vunpack.c.l.b16 %v304
    %v344 = vunpack.c.l.b16 %v305
    %v345 = vunpack.c.l.b16 %v306
    %v346 = vunpack.c.l.b16 %v307
    %v347 = vunpack.c.l.b16 %v308
    %v348 = vunpack.c.l.b16 %v309
    %v349 = vunpack.c.l.b16 %v310
    %v350 = vunpack.c.l.b16 %v311
    %v351 = vunpack.c.l.b16 %v312
    %v352 = vunpack.c.l.b16 %v313
    %v353 = vunpack.c.l.b16 %v314
    %v354 = vunpack.c.l.b16 %v315
    %v355 = vunpack.c.l.b16 %v316
    %v356 = vpack.c.b16 %v341, %v340
    %v357 = vpack.c.b16 %v343, %v342
    %v358 = vpack.c.b16 %v345, %v344
    %v359 = vpack.c.b16 %v347, %v346
    %v360 = vpack.c.b16 %v349, %v348
    %v361 = vpack.c.b16 %v351, %v350
    %v362 = vpack.c.b16 %v353, %v352
    %v363 = vpack.c.b16 %v355, %v354
    %372 = vmatprep.subr.bf16.mxu0 0
    %373 = vmatpush1.bf16.msra.mxu0 %v363
    %374 = vmatprep.subr.bf16.mxu0 0
    %375 = vmatpush1.bf16.msra.mxu0 %v362
    %376 = vmatprep.subr.bf16.mxu0 0
    %377 = vmatpush1.bf16.msra.mxu0 %v361
    %378 = vmatprep.subr.bf16.mxu0 0
    %379 = vmatpush1.bf16.msra.mxu0 %v360
    %380 = vmatprep.subr.bf16.mxu0 0
    %381 = vmatpush1.bf16.msra.mxu0 %v359
    %382 = vmatprep.subr.bf16.mxu0 0
    %383 = vmatpush1.bf16.msra.mxu0 %v358
    %384 = vmatprep.subr.bf16.mxu0 0
    %385 = vmatpush1.bf16.msra.mxu0 %v357
    %386 = vmatprep.subr.bf16.mxu0 0
    %387 = vmatpush1.bf16.msra.mxu0 %v356
    %388 = vmatprep.subr.bf16.mxu0 0
    %389 = vmatpush2.bf16.msra.mxu0 0
    %390 = vmatprep.subr.bf16.mxu0 0
    %391 = vmatpush2.bf16.msra.mxu0 0
    %392 = vmatprep.subr.bf16.mxu0 0
    %393 = vmatpush2.bf16.msra.mxu0 0
    %394 = vmatprep.subr.bf16.mxu0 0
    %395 = vmatpush2.bf16.msra.mxu0 0
    %396 = vmatprep.subr.bf16.mxu0 0
    %397 = vmatpush2.bf16.msra.mxu0 0
    %398 = vmatprep.subr.bf16.mxu0 0
    %399 = vmatpush2.bf16.msra.mxu0 0
    %400 = vmatprep.subr.bf16.mxu0 0
    %401 = vmatpush2.bf16.msra.mxu0 0
    %402 = vmatprep.subr.bf16.mxu0 0
    %403 = vmatpush2.bf16.msra.mxu0 0
    %404 = vmatprep.mubr.bf16.mxu0 0
    %405 = vmatmul.mubr.bf16.gmra.mxu0 %v299
    %v406 = vpop.f32.mrf.mxu0
    %v407 = vadd.f32 %v322, %v406
    %v408 = vpop.f32.mrf.mxu0
    %v409 = vpop.f32.mrf.mxu0
    %v410 = vadd.f32 %v322, %v409
    %v411 = vpop.f32.mrf.mxu0
    %412 = vmatprep.mubr.bf16.mxu0 0
    %413 = vmatmul.mubr.bf16.gmra.mxu0 %v300
    %v414 = vpop.f32.mrf.mxu0
    %v415 = vadd.f32 %v322, %v414
    %v416 = vpop.f32.mrf.mxu0
    %v417 = vpop.f32.mrf.mxu0
    %v418 = vpop.f32.mrf.mxu0
    %419 = vdwg.mxu0
    %v420 = vlaneseq
    %v421 = vand.u32 %v420, 127
    %vm422 = vcmp.eq.s32.totalorder %v421, 0
    %v423 = vxor.u32 %v407, 2147483648
    %v424 = vxor.u32 %v410, 2147483648
    %v425 = vxor.u32 %v415, 2147483648
    %v426 = vmul.f32 %v423, 1.442695
    %v427 = vpow.pop %v426
    %v428 = vmul.f32 %v424, 1.442695
    %v429 = vpow.pop %v428
    %v430 = vmul.f32 %v425, 1.442695
    %v431 = vpow.pop %v430
    %v432 = vadd.f32 %v427, 1.0
    %v433 = vadd.f32 %v429, 1.0
    %v434 = vadd.f32 %v431, 1.0
    %v435 = vrcp.pop %v432
    %v436 = vmul.f32 1.0, %v435
    %v437 = vrcp.pop %v433
    %v438 = vmul.f32 1.0, %v437
    %v439 = vrcp.pop %v434
    %v440 = vmul.f32 1.0, %v439
    %v441 = vsel %vm422, %v436, %v407
    %v442 = vsel %vm422, %v438, %v410
    %v443 = vsel %vm422, %v440, %v415
    %444 = vst [vmem:[#allocation10] sm:$0xff] %v441
    %445 = vst [vmem:[#allocation10 + $0x8] sm:$0xff] %v442
    %446 = vst [vmem:[#allocation10 + $0x10] sm:$0xff] %v443
    // Predicated region
    $region46: #{tpu_custom_call.1} parent=1 // pred_check
      _
    $region47: #{tpu_custom_call.1} parent=1 // pred_check_branch
      %448 = sbr.rel (0) target = $region49
    $region48: #{tpu_custom_call.1} parent=1 // pred_region
      %s450 = ssub.s32 384, 384
      %451 = vsyncadd [#allocation4], %s450
      %s452 = sshll.u32 [#allocation10], 4
      %s453 = int_to_ptr.vmem [resolvable:$true] %s452
      %458 = dma.vmem_to_hbm [thread:$0]  %s453, 384, %s7, [#allocation4], 128, 128, 8
    $region49: #{tpu_custom_call.1} parent=1 // pred_fallthru
      _
    // Predicated region
    $region50: #{tpu_custom_call.1} parent=1 // pred_check
      _
    $region51: #{tpu_custom_call.1} parent=1 // pred_check_branch
      %460 = sbr.rel (0) target = $region53
    $region52: #{tpu_custom_call.1} parent=1 // pred_region
      %461 = dma.done [#allocation4], 384
    $region53: #{tpu_custom_call.1} parent=1 // pred_fallthru
      _
    %462 = vsyncpa [#allocation3], 1
    %463 = vsyncpa [#allocation6], 1
    %464 = vsyncpa [#allocation9], 1
    %465 = vsyncpa [#allocation4], 1

</llo_original>
